<compile_context>
chip_gen: v7x
topology: tpu7x:2x2x1
jax: 0.10.0
libtpu: 0.0.40
codegen_flags: <defaults>
</compile_context>

<pallas_src>
import functools

import jax
import jax.numpy as jnp
import numpy as np
from jax.experimental import pallas as pl
from jax.experimental.pallas import tpu as pltpu

EPS = 1e-5  # nn.BatchNorm2d default


def _vmem_limit_bytes():
    """Generation-dependent scoped-VMEM limit: ~3/4 of physical, clamped to [32, 96] MiB."""
    try:
        phys = int(pltpu.get_tpu_info().vmem_capacity_bytes)
    except Exception:  # query unavailable -> conservative default (v7x-safe)
        phys = 64 * 1024 * 1024
    return int(max(32 << 20, min(96 << 20, (phys * 3) // 4)))


def _choose_tile_m(m, bytes_per_row, budget_bytes, max_rows=2048):
    """Largest multiple-of-8 divisor of m (<= max_rows) whose working set fits budget."""
    best = 0
    for tm in range(8, min(m, max_rows) + 1, 8):
        if m % tm == 0 and tm * bytes_per_row <= budget_bytes:
            best = tm
    return best if best else m  # fallback: whole-image block (tiny / oddly-shaped m)


def _conv_bias_relu(x_ref, w_ref, b_ref):
    """One merged-K MXU matmul + bias + ReLU.

    x_ref: (1, tile_m, 16*Cin) bf16 merged-K space-to-depth rows
    w_ref: (16*Cin, Cout)      bf16
    b_ref: (1, Cout)           f32
    returns (tile_m, Cout)     f32
    """
    y = jnp.dot(x_ref[0], w_ref[...], preferred_element_type=jnp.float32)
    return jnp.maximum(y + b_ref[...], 0.0)


def _stats_kernel(x_ref, w_ref, b_ref, sum_ref, ssq_ref):
    # Pass 1: conv + bias + ReLU, then per-tile per-channel sum / sum-of-squares.
    y = _conv_bias_relu(x_ref, w_ref, b_ref)
    c = y.shape[-1]
    sum_ref[...] = jnp.sum(y, axis=0, keepdims=True).reshape(1, 1, 1, c)
    ssq_ref[...] = jnp.sum(y * y, axis=0, keepdims=True).reshape(1, 1, 1, c)


def _norm_kernel(x_ref, w_ref, b_ref, scale_ref, shift_ref, o_ref):
    # Pass 2: recompute the cheap conv, apply folded BN affine, store (bf16 by default).
    y = _conv_bias_relu(x_ref, w_ref, b_ref)
    y = y * scale_ref[...] + shift_ref[...]
    o_ref[...] = y.reshape(o_ref.shape).astype(o_ref.dtype)


def std_conv(x, weight, bias, gamma, beta, *, stride=2, padding=1,
             gemm_dtype=jnp.bfloat16, out_dtype=jnp.bfloat16, out_layout="NHWC"):
    """StdConv forward: Dropout(BN(ReLU(Conv2d(x)))), dropout = identity (eval mode).

    x: [N, Cin, H, W] f32 (NCHW); weight: [Cout, Cin, 3, 3].
    Default fast path returns NHWC / bf16 with no post-kernel reformat; pass
    out_layout="NCHW", out_dtype=jnp.float32 for strict PyTorch interface parity.
    """
    n, cin, h, w = x.shape
    cout, cin_w, kh, kw = weight.shape
    assert cin_w == cin and kh == 3 and kw == 3 and stride == 2 and padding == 1, (
        "kernel specialized to StdConv defaults: 3x3, stride 2, padding 1")

    ho = (h + 2 * padding - kh) // stride + 1
    wo = (w + 2 * padding - kw) // stride + 1
    hs, ws = ho + 1, wo + 1                     # space-to-depth grid (+1 halo cell)
    k4 = 4 * cin
    k16 = 16 * cin                              # merged contraction depth
    m = ho * wo                                 # rows of the conv GEMM per image

    # ---- input: NCHW -> padded NHWC -> 2x2 cells -> merged-K rows [N, Ho*Wo, 16*Cin]
    # Each output position gathers its 2x2 cell neighborhood (di, dj) into channels,
    # so the conv becomes a single GEMM (out-of-range taps hit zero weight rows).
    x_nhwc = jnp.transpose(x, (0, 2, 3, 1))
    xp = jnp.pad(x_nhwc, ((0, 0),
                          (padding, 2 * hs - h - padding),
                          (padding, 2 * ws - w - padding),
                          (0, 0)))
    cells = (xp.reshape(n, hs, 2, ws, 2, cin)
               .transpose(0, 1, 3, 2, 4, 5))                      # [n, hs, ws, pr, pc, c]
    parts = [cells[:, di:di + ho, dj:dj + wo].reshape(n, ho, wo, k4)
             for di in (0, 1) for dj in (0, 1)]                   # (di, dj)-major order
    xpp = (jnp.concatenate(parts, axis=-1)                        # [n, ho, wo, 16*cin]
              .reshape(n, m, k16)
              .astype(gemm_dtype))

    # ---- weights: single merged-K slab [16*Cin, Cout].
    # Tap (i, j) lands at K index (di=i//2, dj=j//2, pr=i%2, pc=j%2, c); the
    # zero-padded i==3 / j==3 rows make out-of-range taps a no-op.
    wp = jnp.pad(weight, ((0, 0), (0, 0), (0, 1), (0, 1)))        # [Co, Ci, 4, 4]
    w_k = (wp.reshape(cout, cin, 2, 2, 2, 2)                      # co,c,di,pr,dj,pc
             .transpose(2, 4, 3, 5, 1, 0)                         # di,dj,pr,pc,c,co
             .reshape(k16, cout)
             .astype(gemm_dtype))
    b2d = bias.astype(jnp.float32).reshape(1, cout)

    # ---- row tiling + compiler params
    vmem_limit = _vmem_limit_bytes()
    out_bytes = np.dtype(out_dtype).itemsize
    # per-row VMEM estimate: bf16 input block (x2 double-buffer) + output block (x2)
    # + f32 GEMM result / epilogue temporaries
    bytes_per_row = 2 * 2 * k16 + 2 * out_bytes * cout + 3 * 4 * cout
    tile_m = _choose_tile_m(m, bytes_per_row,
                            budget_bytes=min(vmem_limit // 4, 16 << 20))
    n_tiles = m // tile_m

    x_spec = pl.BlockSpec((1, tile_m, k16), lambda i, r: (i, r, 0))
    w_spec = pl.BlockSpec((k16, cout), lambda i, r: (0, 0))
    v_spec = pl.BlockSpec((1, cout), lambda i, r: (0, 0))
    s_spec = pl.BlockSpec((1, 1, 1, cout), lambda i, r: (i, r, 0, 0))
    cparams = pltpu.CompilerParams(dimension_semantics=("parallel", "parallel"),
                                   vmem_limit_bytes=vmem_limit)

    # ---- pass 1: per-(image, tile) per-channel sum / sum-of-squares partials
    sum_y, ssq_y = pl.pallas_call(
        _stats_kernel,
        out_shape=(jax.ShapeDtypeStruct((n, n_tiles, 1, cout), jnp.float32),
                   jax.ShapeDtypeStruct((n, n_tiles, 1, cout), jnp.float32)),
        grid=(n, n_tiles),
        in_specs=[x_spec, w_spec, v_spec],
        out_specs=(s_spec, s_spec),
        compiler_params=cparams,
    )(xpp, w_k, b2d)

    # ---- finalize BatchNorm batch statistics (tiny [Cout] math, f32)
    m_total = n * m
    tot = jnp.sum(sum_y, axis=(0, 1, 2))
    tot2 = jnp.sum(ssq_y, axis=(0, 1, 2))
    mean = tot / m_total
    var = jnp.maximum(tot2 / m_total - mean * mean, 0.0)   # biased (train-mode) var
    rstd = jax.lax.rsqrt(var + EPS)
    g = gamma.astype(jnp.float32)
    scale = (g * rstd).reshape(1, cout)
    shift = (beta.astype(jnp.float32) - mean * g * rstd).reshape(1, cout)

    # ---- pass 2: recompute conv, apply folded BN affine, write unpadded NHWC rows
    out_flat = pl.pallas_call(
        _norm_kernel,
        out_shape=jax.ShapeDtypeStruct((n, m, cout), out_dtype),
        grid=(n, n_tiles),
        in_specs=[x_spec, w_spec, v_spec, v_spec, v_spec],
        out_specs=pl.BlockSpec((1, tile_m, cout), lambda i, r: (i, r, 0)),
        compiler_params=cparams,
    )(xpp, w_k, b2d, scale, shift)

    out = out_flat.reshape(n, ho, wo, cout)     # splits a major dim: free, no copy
    if out_layout == "NHWC":
        return out                              # default: zero post-kernel reformat
    return jnp.transpose(out, (0, 3, 1, 2))     # optional PyTorch NCHW interface parity


def _reference(x, weight, bias, gamma, beta, *, stride=2, padding=1,
               gemm_dtype=jnp.bfloat16):
    # Same math as the module (conv -> +bias -> ReLU -> train-mode BN), with the conv
    # inputs cast to the same GEMM dtype the kernel uses (f32 accumulation / BN math).
    nout = weight.shape[0]
    y = jax.lax.conv_general_dilated(
        x.astype(gemm_dtype), weight.astype(gemm_dtype),
        window_strides=(stride, stride),
        padding=((padding, padding), (padding, padding)),
        dimension_numbers=("NCHW", "OIHW", "NCHW"),
        preferred_element_type=jnp.float32)
    y = y + bias.reshape(1, nout, 1, 1)
    y = jnp.maximum(y, 0.0)
    mean = y.mean(axis=(0, 2, 3), keepdims=True)
    var = ((y - mean) ** 2).mean(axis=(0, 2, 3), keepdims=True)
    y = (y - mean) * jax.lax.rsqrt(var + EPS)
    return y * gamma.reshape(1, nout, 1, 1) + beta.reshape(1, nout, 1, 1)


if __name__ == "__main__":
    nin, nout = 4, 8
    key = jax.random.PRNGKey(0)
    kx, kw_, kb, kg, kbe = jax.random.split(key, 5)

    x = jax.random.normal(kx, (2, nin, 16, 16), jnp.float32)
    weight = 0.1 * jax.random.normal(kw_, (nout, nin, 3, 3), jnp.float32)
    bias = 0.1 * jax.random.normal(kb, (nout,), jnp.float32)
    gamma = 1.0 + 0.1 * jax.random.normal(kg, (nout,), jnp.float32)
    beta = 0.1 * jax.random.normal(kbe, (nout,), jnp.float32)

    ref = _reference(x, weight, bias, gamma, beta)                 # NCHW f32

    # Default fast path: NHWC layout, bf16 output (min HBM bytes, no reformat).
    out_fast = jax.jit(functools.partial(
        std_conv, out_layout="NHWC", out_dtype=jnp.bfloat16))(
        x, weight, bias, gamma, beta)
    out_fast = jax.block_until_ready(out_fast)
    ref_nhwc = jnp.transpose(ref, (0, 2, 3, 1))
    np.testing.assert_allclose(np.asarray(out_fast).astype(np.float32),
                               np.asarray(ref_nhwc), rtol=1e-2, atol=1e-2)

    # PyTorch interface-parity path: NCHW layout, f32 output.
    out_parity = jax.jit(functools.partial(
        std_conv, out_layout="NCHW", out_dtype=jnp.float32))(
        x, weight, bias, gamma, beta)
    out_parity = jax.block_until_ready(out_parity)
    np.testing.assert_allclose(np.asarray(out_parity), np.asarray(ref),
                               rtol=2e-3, atol=2e-3)

    print("KERNEL_OK")
</pallas_src>

<mosaic_0001>
module attributes {stable_mosaic.version = 11 : i64} {
  func.func @_stats_kernel(%arg0: i32, %arg1: i32, %arg2: memref<1x64x64xbf16, #tpu.memory_space<vmem>>, %arg3: memref<64x8xbf16, #tpu.memory_space<vmem>>, %arg4: memref<1x8xf32, #tpu.memory_space<vmem>>, %arg5: memref<1x1x1x8xf32, #tpu.memory_space<vmem>>, %arg6: memref<1x1x1x8xf32, #tpu.memory_space<vmem>>) attributes {dimension_semantics = [#tpu.dimension_semantics<parallel>, #tpu.dimension_semantics<parallel>], iteration_bounds = array<i64: 2, 1>, scalar_prefetch = 0 : i64, scratch_operands = 0 : i64, tpu.core_type = #tpu.core_type<tc>, window_params = [{transform_indices = @transform_0, window_bounds = array<i64: 1, 64, 64>}, {pipeline_mode = #tpu.pipeline_mode<synchronous>, transform_indices = @transform_1, window_bounds = array<i64: 64, 8>}, {pipeline_mode = #tpu.pipeline_mode<synchronous>, transform_indices = @transform_2, window_bounds = array<i64: 1, 8>}, {transform_indices = @transform_3, window_bounds = array<i64: 1, 1, 1, 8>}, {transform_indices = @transform_4, window_bounds = array<i64: 1, 1, 1, 8>}]} {
    %c0 = arith.constant 0 : index
    %c0_0 = arith.constant 0 : index
    %c0_1 = arith.constant 0 : index
    %0 = vector.load %arg2[%c0, %c0_0, %c0_1] : memref<1x64x64xbf16, #tpu.memory_space<vmem>>, vector<1x64x64xbf16>
    %1 = vector.shape_cast %0 : vector<1x64x64xbf16> to vector<64x64xbf16>
    %c0_2 = arith.constant 0 : index
    %c0_3 = arith.constant 0 : index
    %2 = vector.load %arg3[%c0_2, %c0_3] : memref<64x8xbf16, #tpu.memory_space<vmem>>, vector<64x8xbf16>
    %cst = arith.constant dense<0.000000e+00> : vector<64x8xf32>
    %3 = tpu.matmul %1, %2, %cst {dimension_numbers = #tpu.dot_dimension_numbers<[1], [0], [0], [1], [0, 0, 1, 1], [], []>} : vector<64x64xbf16>, vector<64x8xbf16>, vector<64x8xf32> -> vector<64x8xf32>
    %c0_4 = arith.constant 0 : index
    %c0_5 = arith.constant 0 : index
    %4 = vector.load %arg4[%c0_4, %c0_5] : memref<1x8xf32, #tpu.memory_space<vmem>>, vector<1x8xf32>
    %5 = vector.broadcast %4 : vector<1x8xf32> to vector<64x8xf32>
    %6 = arith.addf %3, %5 : vector<64x8xf32>
    %cst_6 = arith.constant 0.000000e+00 : f32
    %7 = vector.broadcast %cst_6 : f32 to vector<64x8xf32>
    %8 = arith.maximumf %6, %7 : vector<64x8xf32>
    %cst_7 = arith.constant dense<0.000000e+00> : vector<8xf32>
    %9 = vector.multi_reduction <add>, %8, %cst_7 [0] : vector<64x8xf32> to vector<8xf32>
    %10 = vector.shape_cast %9 : vector<8xf32> to vector<1x8xf32>
    %11 = vector.shape_cast %10 : vector<1x8xf32> to vector<1x1x1x8xf32>
    %c0_8 = arith.constant 0 : index
    %c0_9 = arith.constant 0 : index
    %c0_10 = arith.constant 0 : index
    %c0_11 = arith.constant 0 : index
    %12 = vector.load %arg5[%c0_8, %c0_9, %c0_10, %c0_11] : memref<1x1x1x8xf32, #tpu.memory_space<vmem>>, vector<1x1x1x8xf32>
    tpu.vector_store %arg5[%c0_8, %c0_9, %c0_10, %c0_11], %11 {strides = array<i32>} : memref<1x1x1x8xf32, #tpu.memory_space<vmem>>, vector<1x1x1x8xf32>,
    %13 = arith.mulf %8, %8 : vector<64x8xf32>
    %cst_12 = arith.constant dense<0.000000e+00> : vector<8xf32>
    %14 = vector.multi_reduction <add>, %13, %cst_12 [0] : vector<64x8xf32> to vector<8xf32>
    %15 = vector.shape_cast %14 : vector<8xf32> to vector<1x8xf32>
    %16 = vector.shape_cast %15 : vector<1x8xf32> to vector<1x1x1x8xf32>
    %c0_13 = arith.constant 0 : index
    %c0_14 = arith.constant 0 : index
    %c0_15 = arith.constant 0 : index
    %c0_16 = arith.constant 0 : index
    %17 = vector.load %arg6[%c0_13, %c0_14, %c0_15, %c0_16] : memref<1x1x1x8xf32, #tpu.memory_space<vmem>>, vector<1x1x1x8xf32>
    tpu.vector_store %arg6[%c0_13, %c0_14, %c0_15, %c0_16], %16 {strides = array<i32>} : memref<1x1x1x8xf32, #tpu.memory_space<vmem>>, vector<1x1x1x8xf32>,
    return
  }
  func.func @transform_0(%arg0: i32, %arg1: i32) -> (i32, i32, i32) {
    %c0_i32 = arith.constant 0 : i32
    %c0_i32_0 = arith.constant 0 : i32
    return %arg0, %arg1, %c0_i32 : i32, i32, i32
  }
  func.func @transform_1(%arg0: i32, %arg1: i32) -> (i32, i32) {
    %c0_i32 = arith.constant 0 : i32
    %c0_i32_0 = arith.constant 0 : i32
    %c0_i32_1 = arith.constant 0 : i32
    return %c0_i32, %c0_i32_0 : i32, i32
  }
  func.func @transform_2(%arg0: i32, %arg1: i32) -> (i32, i32) {
    %c0_i32 = arith.constant 0 : i32
    %c0_i32_0 = arith.constant 0 : i32
    %c0_i32_1 = arith.constant 0 : i32
    return %c0_i32, %c0_i32_0 : i32, i32
  }
  func.func @transform_3(%arg0: i32, %arg1: i32) -> (i32, i32, i32, i32) {
    %c0_i32 = arith.constant 0 : i32
    %c0_i32_0 = arith.constant 0 : i32
    %c0_i32_1 = arith.constant 0 : i32
    return %arg0, %arg1, %c0_i32, %c0_i32_0 : i32, i32, i32, i32
  }
  func.func @transform_4(%arg0: i32, %arg1: i32) -> (i32, i32, i32, i32) {
    %c0_i32 = arith.constant 0 : i32
    %c0_i32_0 = arith.constant 0 : i32
    %c0_i32_1 = arith.constant 0 : i32
    return %arg0, %arg1, %c0_i32, %c0_i32_0 : i32, i32, i32, i32
  }
}

module attributes {stable_mosaic.version = 11 : i64} {
  func.func @_norm_kernel(%arg0: i32, %arg1: i32, %arg2: memref<1x64x64xbf16, #tpu.memory_space<vmem>>, %arg3: memref<64x8xbf16, #tpu.memory_space<vmem>>, %arg4: memref<1x8xf32, #tpu.memory_space<vmem>>, %arg5: memref<1x8xf32, #tpu.memory_space<vmem>>, %arg6: memref<1x8xf32, #tpu.memory_space<vmem>>, %arg7: memref<1x64x8xbf16, #tpu.memory_space<vmem>>) attributes {dimension_semantics = [#tpu.dimension_semantics<parallel>, #tpu.dimension_semantics<parallel>], iteration_bounds = array<i64: 2, 1>, scalar_prefetch = 0 : i64, scratch_operands = 0 : i64, tpu.core_type = #tpu.core_type<tc>, window_params = [{transform_indices = @transform_0, window_bounds = array<i64: 1, 64, 64>}, {pipeline_mode = #tpu.pipeline_mode<synchronous>, transform_indices = @transform_1, window_bounds = array<i64: 64, 8>}, {pipeline_mode = #tpu.pipeline_mode<synchronous>, transform_indices = @transform_2, window_bounds = array<i64: 1, 8>}, {pipeline_mode = #tpu.pipeline_mode<synchronous>, transform_indices = @transform_3, window_bounds = array<i64: 1, 8>}, {pipeline_mode = #tpu.pipeline_mode<synchronous>, transform_indices = @transform_4, window_bounds = array<i64: 1, 8>}, {transform_indices = @transform_5, window_bounds = array<i64: 1, 64, 8>}]} {
    %c0 = arith.constant 0 : index
    %c0_0 = arith.constant 0 : index
    %c0_1 = arith.constant 0 : index
    %0 = vector.load %arg2[%c0, %c0_0, %c0_1] : memref<1x64x64xbf16, #tpu.memory_space<vmem>>, vector<1x64x64xbf16>
    %1 = vector.shape_cast %0 : vector<1x64x64xbf16> to vector<64x64xbf16>
    %c0_2 = arith.constant 0 : index
    %c0_3 = arith.constant 0 : index
    %2 = vector.load %arg3[%c0_2, %c0_3] : memref<64x8xbf16, #tpu.memory_space<vmem>>, vector<64x8xbf16>
    %cst = arith.constant dense<0.000000e+00> : vector<64x8xf32>
    %3 = tpu.matmul %1, %2, %cst {dimension_numbers = #tpu.dot_dimension_numbers<[1], [0], [0], [1], [0, 0, 1, 1], [], []>} : vector<64x64xbf16>, vector<64x8xbf16>, vector<64x8xf32> -> vector<64x8xf32>
    %c0_4 = arith.constant 0 : index
    %c0_5 = arith.constant 0 : index
    %4 = vector.load %arg4[%c0_4, %c0_5] : memref<1x8xf32, #tpu.memory_space<vmem>>, vector<1x8xf32>
    %5 = vector.broadcast %4 : vector<1x8xf32> to vector<64x8xf32>
    %6 = arith.addf %3, %5 : vector<64x8xf32>
    %cst_6 = arith.constant 0.000000e+00 : f32
    %7 = vector.broadcast %cst_6 : f32 to vector<64x8xf32>
    %8 = arith.maximumf %6, %7 : vector<64x8xf32>
    %c0_7 = arith.constant 0 : index
    %c0_8 = arith.constant 0 : index
    %9 = vector.load %arg5[%c0_7, %c0_8] : memref<1x8xf32, #tpu.memory_space<vmem>>, vector<1x8xf32>
    %10 = vector.broadcast %9 : vector<1x8xf32> to vector<64x8xf32>
    %11 = arith.mulf %8, %10 : vector<64x8xf32>
    %c0_9 = arith.constant 0 : index
    %c0_10 = arith.constant 0 : index
    %12 = vector.load %arg6[%c0_9, %c0_10] : memref<1x8xf32, #tpu.memory_space<vmem>>, vector<1x8xf32>
    %13 = vector.broadcast %12 : vector<1x8xf32> to vector<64x8xf32>
    %14 = arith.addf %11, %13 : vector<64x8xf32>
    %15 = vector.shape_cast %14 : vector<64x8xf32> to vector<1x64x8xf32>
    %16 = arith.truncf %15 : vector<1x64x8xf32> to vector<1x64x8xbf16>
    %c0_11 = arith.constant 0 : index
    %c0_12 = arith.constant 0 : index
    %c0_13 = arith.constant 0 : index
    %17 = vector.load %arg7[%c0_11, %c0_12, %c0_13] : memref<1x64x8xbf16, #tpu.memory_space<vmem>>, vector<1x64x8xbf16>
    tpu.vector_store %arg7[%c0_11, %c0_12, %c0_13], %16 {strides = array<i32>} : memref<1x64x8xbf16, #tpu.memory_space<vmem>>, vector<1x64x8xbf16>,
    return
  }
  func.func @transform_0(%arg0: i32, %arg1: i32) -> (i32, i32, i32) {
    %c0_i32 = arith.constant 0 : i32
    %c0_i32_0 = arith.constant 0 : i32
    return %arg0, %arg1, %c0_i32 : i32, i32, i32
  }
  func.func @transform_1(%arg0: i32, %arg1: i32) -> (i32, i32) {
    %c0_i32 = arith.constant 0 : i32
    %c0_i32_0 = arith.constant 0 : i32
    %c0_i32_1 = arith.constant 0 : i32
    return %c0_i32, %c0_i32_0 : i32, i32
  }
  func.func @transform_2(%arg0: i32, %arg1: i32) -> (i32, i32) {
    %c0_i32 = arith.constant 0 : i32
    %c0_i32_0 = arith.constant 0 : i32
    %c0_i32_1 = arith.constant 0 : i32
    return %c0_i32, %c0_i32_0 : i32, i32
  }
  func.func @transform_3(%arg0: i32, %arg1: i32) -> (i32, i32) {
    %c0_i32 = arith.constant 0 : i32
    %c0_i32_0 = arith.constant 0 : i32
    %c0_i32_1 = arith.constant 0 : i32
    return %c0_i32, %c0_i32_0 : i32, i32
  }
  func.func @transform_4(%arg0: i32, %arg1: i32) -> (i32, i32) {
    %c0_i32 = arith.constant 0 : i32
    %c0_i32_0 = arith.constant 0 : i32
    %c0_i32_1 = arith.constant 0 : i32
    return %c0_i32, %c0_i32_0 : i32, i32
  }
  func.func @transform_5(%arg0: i32, %arg1: i32) -> (i32, i32, i32) {
    %c0_i32 = arith.constant 0 : i32
    %c0_i32_0 = arith.constant 0 : i32
    return %arg0, %arg1, %c0_i32 : i32, i32, i32
  }
}

</mosaic_0001>

<llo_original>
// kernel: std_conv.2
$region0: #{std_conv.2}
  #allocation0 [shape = 'u32[]', space=smem, size = 0x4, offset = 0x4, fixed_abs, tag = 'smem constant byte address 0x4 - core index']
  #allocation1 [shape = 'u32[144,128]{1,0:T(1,128)}', space=vmem, size = 0x12000, scoped, tag = 'internal scratch']
  %s0 = inlined_call_operand.vmem [shape: bf16[2,64,64], index: 0, kind: input, shape index: {}]
  %s1 = inlined_call_operand.vmem [shape: bf16[64,8], index: 1, kind: input, shape index: {}]
  %s2 = inlined_call_operand.vmem [shape: f32[1,8], index: 2, kind: input, shape index: {}]
  %s3 = inlined_call_operand.vmem [shape: f32[2,1,1,8], index: 3, kind: output, shape index: {0}]
  %s4 = inlined_call_operand.vmem [shape: f32[2,1,1,8], index: 4, kind: output, shape index: {1}]
  %5 = xla_tuple %s3, %s4
  %s6 = sld [smem:[#allocation0]]
  $region53: #{std_conv.2} parent=0
    _
  %s8 = ssub.s32 1, %s6
  %s9 = scalar_select 0, %s8, %s6
  loop: start=0, step=1, limit=4
  $region2: #{std_conv.2} parent=0 // loop_pre_header
    _
  $region3: #{std_conv.2} parent=0 // loop_header
    %s11 = sphi 0, %s15
    %p12 = scmp.ge.s32.totalorder %s11, 4
    %s18 = sphi 0, %s30
    %s19 = sphi 0, %s26
    %s20 = sphi 0, %s18
    %s21 = sphi 0, %s19
    %s22 = sphi 0, %s20
    %s23 = sphi 0, %s21
    %s35 = sphi 0, %s37
    %s38 = sphi 0, %s35
    %s39 = sphi 0, %s38
    %s55 = sphi 0, %s39
    %s59 = sphi 0, %s59
    %s61 = sphi 0, %s59
    %s62 = sphi 0, %s61
    %s76 = sphi 0, %s62
    %s80 = sphi 0, %s80
    %s82 = sphi 0, %s80
    %s83 = sphi 0, %s82
    %s97 = sphi 0, %s83
    %s105 = sphi 0, %s107
    %s108 = sphi 0, %s105
    %s109 = sphi 0, %s108
    %s125 = sphi 0, %s109
    %s133 = sphi 0, %s135
    %s136 = sphi 0, %s133
    %s137 = sphi 0, %s136
    %s153 = sphi 0, %s137
  $region4: #{std_conv.2} parent=0 // loop_header_branch
    %14 = sbr.rel (%p12) target = $region8
  $region5: #{std_conv.2} parent=0 // loop_body
    %s16 = ssub.s32 %s11, 1
    %s17 = ssub.s32 %s11, 2
    %s24 = sadd.s32 1, %s19
    %p25 = scmp.ge.s32.totalorder %s24, 1
    %s26 = scalar_select %p25, 0, %s24
    %s27 = sadd.s32 1, %s18
    %s28 = scalar_select %p25, %s27, %s18
    %p29 = scmp.ge.s32.totalorder %s28, 2
    %s30 = scalar_select %p29, 0, %s28
    %s31 = ssub.s32 %s18, %s30
    %s32 = ssub.s32 %s19, %s26
    %s33 = sor.u32 %s31, %s32
    %p34 = scmp.eq.s32.totalorder %s33, 0
    %s36 = sadd.s32 %s35, 1
    %s37 = scalar_select %p34, %s35, %s36
    %p40 = pneg %p34
    %p41 = scmp.eq.s32.totalorder %s11, 1
    %p42 = por %p40, %p41
    %p43 = scmp.ne.s32.totalorder %s35, %s38
    %p44 = scmp.eq.s32.totalorder %s11, 0
    %p45 = por %p43, %p44
    %p46 = scmp.ne.s32.totalorder %s35, %s38
    %p47 = scmp.eq.s32.totalorder %s16, 1
    %p48 = por %p46, %p47
    %p49 = scmp.ne.s32.totalorder %s38, %s39
    %p50 = scmp.eq.s32.totalorder %s16, 0
    %p51 = por %p49, %p50
    %p52 = scmp.ne.s32.totalorder %s38, %s39
    %p53 = scmp.eq.s32.totalorder %s17, 1
    %p54 = por %p52, %p53
    %p56 = scmp.ne.s32.totalorder %s39, %s55
    %p57 = scmp.eq.s32.totalorder %s17, 0
    %p58 = por %p56, %p57
    %s60 = sadd.s32 %s59, 1
    %p63 = scmp.eq.s32.totalorder %s11, 1
    %p64 = scmp.ne.s32.totalorder %s59, %s61
    %p65 = scmp.eq.s32.totalorder %s11, 0
    %p66 = por %p64, %p65
    %p67 = scmp.ne.s32.totalorder %s59, %s61
    %p68 = scmp.eq.s32.totalorder %s16, 1
    %p69 = por %p67, %p68
    %p70 = scmp.ne.s32.totalorder %s61, %s62
    %p71 = scmp.eq.s32.totalorder %s16, 0
    %p72 = por %p70, %p71
    %p73 = scmp.ne.s32.totalorder %s61, %s62
    %p74 = scmp.eq.s32.totalorder %s17, 1
    %p75 = por %p73, %p74
    %p77 = scmp.ne.s32.totalorder %s62, %s76
    %p78 = scmp.eq.s32.totalorder %s17, 0
    %p79 = por %p77, %p78
    %s81 = sadd.s32 %s80, 1
    %p84 = scmp.eq.s32.totalorder %s11, 1
    %p85 = scmp.ne.s32.totalorder %s80, %s82
    %p86 = scmp.eq.s32.totalorder %s11, 0
    %p87 = por %p85, %p86
    %p88 = scmp.ne.s32.totalorder %s80, %s82
    %p89 = scmp.eq.s32.totalorder %s16, 1
    %p90 = por %p88, %p89
    %p91 = scmp.ne.s32.totalorder %s82, %s83
    %p92 = scmp.eq.s32.totalorder %s16, 0
    %p93 = por %p91, %p92
    %p94 = scmp.ne.s32.totalorder %s82, %s83
    %p95 = scmp.eq.s32.totalorder %s17, 1
    %p96 = por %p94, %p95
    %p98 = scmp.ne.s32.totalorder %s83, %s97
    %p99 = scmp.eq.s32.totalorder %s17, 0
    %p100 = por %p98, %p99
    %s101 = ssub.s32 %s18, %s30
    %s102 = ssub.s32 %s19, %s26
    %s103 = sor.u32 %s101, %s102
    %p104 = scmp.eq.s32.totalorder %s103, 0
    %s106 = sadd.s32 %s105, 1
    %s107 = scalar_select %p104, %s105, %s106
    %p110 = pneg %p104
    %p111 = scmp.eq.s32.totalorder %s11, 1
    %p112 = por %p110, %p111
    %p113 = scmp.ne.s32.totalorder %s105, %s108
    %p114 = scmp.eq.s32.totalorder %s11, 0
    %p115 = por %p113, %p114
    %p116 = scmp.ne.s32.totalorder %s105, %s108
    %p117 = scmp.eq.s32.totalorder %s16, 1
    %p118 = por %p116, %p117
    %p119 = scmp.ne.s32.totalorder %s108, %s109
    %p120 = scmp.eq.s32.totalorder %s16, 0
    %p121 = por %p119, %p120
    %p122 = scmp.ne.s32.totalorder %s108, %s109
    %p123 = scmp.eq.s32.totalorder %s17, 1
    %p124 = por %p122, %p123
    %p126 = scmp.ne.s32.totalorder %s109, %s125
    %p127 = scmp.eq.s32.totalorder %s17, 0
    %p128 = por %p126, %p127
    %s129 = ssub.s32 %s18, %s30
    %s130 = ssub.s32 %s19, %s26
    %s131 = sor.u32 %s129, %s130
    %p132 = scmp.eq.s32.totalorder %s131, 0
    %s134 = sadd.s32 %s133, 1
    %s135 = scalar_select %p132, %s133, %s134
    %p138 = pneg %p132
    %p139 = scmp.eq.s32.totalorder %s11, 1
    %p140 = por %p138, %p139
    %p141 = scmp.ne.s32.totalorder %s133, %s136
    %p142 = scmp.eq.s32.totalorder %s11, 0
    %p143 = por %p141, %p142
    %p144 = scmp.ne.s32.totalorder %s133, %s136
    %p145 = scmp.eq.s32.totalorder %s16, 1
    %p146 = por %p144, %p145
    %p147 = scmp.ne.s32.totalorder %s136, %s137
    %p148 = scmp.eq.s32.totalorder %s16, 0
    %p149 = por %p147, %p148
    %p150 = scmp.ne.s32.totalorder %s136, %s137
    %p151 = scmp.eq.s32.totalorder %s17, 1
    %p152 = por %p150, %p151
    %p154 = scmp.ne.s32.totalorder %s137, %s153
    %p155 = scmp.eq.s32.totalorder %s17, 0
    %p156 = por %p154, %p155
    %p157 = scmp.le.s32.totalorder 1, %s11
    %p158 = scmp.lt.s32.totalorder %s11, 3
    %p159 = pnand %p157, %p158
    %p160 = pneg %p159
    // Predicated region
    $region9: #{std_conv.2} parent=5 // pred_check
      _
    $region10: #{std_conv.2} parent=5 // pred_check_branch
      %162 = sbr.rel (%p159) target = $region12
    $region11: #{std_conv.2} parent=5 // pred_region
      %s163 = ssub.s32 %s11, 1
      // Predicated region
      $region13: #{std_conv.2} parent=11 // pred_check
        %p164 = pneg %p72
      $region14: #{std_conv.2} parent=11 // pred_check_branch
        %166 = sbr.rel (%p164) target = $region16
      $region15: #{std_conv.2} parent=11 // pred_region
        _
      $region16: #{std_conv.2} parent=11 // pred_fallthru
        _
      // Predicated region
      $region17: #{std_conv.2} parent=11 // pred_check
        %p167 = pneg %p93
      $region18: #{std_conv.2} parent=11 // pred_check_branch
        %169 = sbr.rel (%p167) target = $region20
      $region19: #{std_conv.2} parent=11 // pred_region
        _
      $region20: #{std_conv.2} parent=11 // pred_fallthru
        _
    $region12: #{std_conv.2} parent=5 // pred_fallthru
      _
    %p170 = scmp.lt.s32.totalorder %s11, 2
    // Predicated region
    $region21: #{std_conv.2} parent=5 // pred_check
      %p171 = pneg %p170
    $region22: #{std_conv.2} parent=5 // pred_check_branch
      %173 = sbr.rel (%p171) target = $region24
    $region23: #{std_conv.2} parent=5 // pred_region
      // Predicated region
      $region25: #{std_conv.2} parent=23 // pred_check
        %p174 = pneg %p45
      $region26: #{std_conv.2} parent=23 // pred_check_branch
        %176 = sbr.rel (%p174) target = $region28
      $region27: #{std_conv.2} parent=23 // pred_region
        %s177 = smul.u32 8, %s19
        %p178 = scmp.lt.s32.totalorder %s18, 1
        %s179 = scalar_select %p178, %s18, 1
        %p180 = scmp.lt.s32.totalorder %s177, 7
        %s181 = scalar_select %p180, %s177, 7
        %s182 = smul.addr %s179, 8
        %s183 = sadd.s32 %s181, %s182
        %s184 = smul.addr %s183, 4
        %s185 = scalar_lea.vmem %s0, %s184
        %s186 = smul.u32 8, %s19
      $region28: #{std_conv.2} parent=23 // pred_fallthru
        _
    $region24: #{std_conv.2} parent=5 // pred_fallthru
      _
    %p187 = scmp.le.s32.totalorder 1, %s11
    %p188 = scmp.lt.s32.totalorder %s11, 3
    %p189 = pnand %p187, %p188
    %p190 = pneg %p189
    // Predicated region
    $region29: #{std_conv.2} parent=5 // pred_check
      _
    $region30: #{std_conv.2} parent=5 // pred_check_branch
      %192 = sbr.rel (%p189) target = $region32
    $region31: #{std_conv.2} parent=5 // pred_region
      %s193 = ssub.s32 %s11, 1
      %s194 = smul.u32 8, %s21
      %p195 = scmp.lt.s32.totalorder %s20, 1
      %s196 = scalar_select %p195, %s20, 1
      %p197 = scmp.lt.s32.totalorder %s194, 7
      %s198 = scalar_select %p197, %s194, 7
      %s199 = smul.addr %s196, 8
      %s200 = sadd.s32 %s198, %s199
      %s201 = smul.addr %s200, 4
      %s202 = scalar_lea.vmem %s0, %s201
      %p203 = pneg %p51
      %p204 = pneg %p48
      %p205 = pneg %p72
      %p206 = pneg %p69
      %p207 = pneg %p93
      %p208 = pneg %p90
      %p209 = pneg %p121
      %p210 = pneg %p118
      %p211 = scmp.lt.s32.totalorder %s20, 1
      %s212 = scalar_select %p211, %s20, 1
      %p213 = scmp.lt.s32.totalorder %s21, 0
      %s214 = scalar_select %p213, %s21, 0
      %s215 = sadd.s32 %s214, %s212
      %s216 = scalar_lea.vmem %s3, %s215
      %p217 = pneg %p149
      %p218 = pneg %p146
      %p219 = scmp.lt.s32.totalorder %s20, 1
      %s220 = scalar_select %p219, %s20, 1
      %p221 = scmp.lt.s32.totalorder %s21, 0
      %s222 = scalar_select %p221, %s21, 0
      %s223 = sadd.s32 %s222, %s220
      %s224 = scalar_lea.vmem %s4, %s223
      %s225 = smul.u32 8, %s21
      %p226 = scmp.lt.s32.totalorder %s20, 1
      %s227 = scalar_select %p226, %s20, 1
      %p228 = scmp.lt.s32.totalorder %s225, 7
      %s229 = scalar_select %p228, %s225, 7
      %s230 = smul.addr %s227, 8
      %s231 = sadd.s32 %s229, %s230
      %s232 = smul.addr %s231, 4
      %s233 = scalar_lea.vmem %s0, %s232
      %s234 = smul.u32 8, %s21
      %p235 = scmp.lt.s32.totalorder %s20, 1
      %s236 = scalar_select %p235, %s20, 1
      %p237 = scmp.lt.s32.totalorder %s21, 0
      %s238 = scalar_select %p237, %s21, 0
      %s239 = sadd.s32 %s238, %s236
      %s240 = scalar_lea.vmem %s3, %s239
      %p241 = scmp.lt.s32.totalorder %s20, 1
      %s242 = scalar_select %p241, %s20, 1
      %p243 = scmp.lt.s32.totalorder %s21, 0
      %s244 = scalar_select %p243, %s21, 0
      %s245 = sadd.s32 %s244, %s242
      %s246 = scalar_lea.vmem %s4, %s245
      %v248 = vld [vmem:[%s233] sm:$0xf]
      %v249 = vld [vmem:[%s233 + $0x4] sm:$0xf]
      %v250 = vld [vmem:[%s233 + $0x8] sm:$0xf]
      %v251 = vld [vmem:[%s233 + $0xc] sm:$0xf]
      %v252 = vld [vmem:[%s233 + $0x10] sm:$0xf]
      %v253 = vld [vmem:[%s233 + $0x14] sm:$0xf]
      %v254 = vld [vmem:[%s233 + $0x18] sm:$0xf]
      %v255 = vld [vmem:[%s233 + $0x1c] sm:$0xf]
      %v256 = vld [vmem:[%s1] sm:$0xf]
      %v257 = vld [vmem:[%s1 + $0x4] sm:$0xf]
      %v258 = vld [vmem:[%s1 + $0x8] sm:$0xf]
      %v259 = vld [vmem:[%s1 + $0xc] sm:$0xf]
      %v260 = vld [vmem:[%s1 + $0x10] sm:$0xf]
      %v261 = vld [vmem:[%s1 + $0x14] sm:$0xf]
      %v262 = vld [vmem:[%s1 + $0x18] sm:$0xf]
      %v263 = vld [vmem:[%s1 + $0x1c] sm:$0xf]
      %v264 = vld [vmem:[%s2] sm:$0x1]
      %v266 = vlaneseq
      %v267 = vshrl.u32 %v266, 7
      %v268 = vsub.s32 0, %v267
      %v269 = vrot.slane %v264, %v268
      %v279 = vunpack.c.l.b16 %v248
      %v280 = vunpack.c.l.b16 %v249
      %v281 = vunpack.c.l.b16 %v250
      %v282 = vunpack.c.l.b16 %v251
      %v283 = vunpack.c.l.b16 %v252
      %v284 = vunpack.c.l.b16 %v253
      %v285 = vunpack.c.l.b16 %v254
      %v286 = vunpack.c.l.b16 %v255
      %v287 = vpack.c.b16 %v280, %v279
      %v288 = vpack.c.b16 %v282, %v281
      %v289 = vpack.c.b16 %v284, %v283
      %v290 = vpack.c.b16 %v286, %v285
      %v299 = vunpack.c.l.b16 %v256
      %v300 = vunpack.c.l.b16 %v257
      %v301 = vunpack.c.l.b16 %v258
      %v302 = vunpack.c.l.b16 %v259
      %v303 = vunpack.c.l.b16 %v260
      %v304 = vunpack.c.l.b16 %v261
      %v305 = vunpack.c.l.b16 %v262
      %v306 = vunpack.c.l.b16 %v263
      %v307 = vpack.c.b16 %v300, %v299
      %v308 = vpack.c.b16 %v302, %v301
      %v309 = vpack.c.b16 %v304, %v303
      %v310 = vpack.c.b16 %v306, %v305
      %vm315 = vcmask 523264
      %v317 = vsel %vm315, %v287, 0
      %v320 = vsel %vm315, %v288, 0
      %v323 = vsel %vm315, %v289, 0
      %v326 = vsel %vm315, %v290, 0
      %328 = vmatprep.subr.bf16.mxu0 0
      %329 = vmatpush1.bf16.msra.mxu0 %v307
      %330 = vmatprep.subr.bf16.mxu0 0
      %331 = vmatpush1.bf16.msra.mxu0 %v308
      %332 = vmatprep.subr.bf16.mxu0 0
      %333 = vmatpush1.bf16.msra.mxu0 %v309
      %334 = vmatprep.subr.bf16.mxu0 0
      %335 = vmatpush1.bf16.msra.mxu0 %v310
      %336 = vmatprep.subr.bf16.mxu0 0
      %337 = vmatpush1.bf16.msra.mxu0 0
      %338 = vmatprep.subr.bf16.mxu0 0
      %339 = vmatpush1.bf16.msra.mxu0 0
      %340 = vmatprep.subr.bf16.mxu0 0
      %341 = vmatpush1.bf16.msra.mxu0 0
      %342 = vmatprep.subr.bf16.mxu0 0
      %343 = vmatpush1.bf16.msra.mxu0 0
      %344 = vmatprep.subr.bf16.mxu0 0
      %345 = vmatpush1.bf16.msra.mxu0 0
      %346 = vmatprep.subr.bf16.mxu0 0
      %347 = vmatpush1.bf16.msra.mxu0 0
      %348 = vmatprep.subr.bf16.mxu0 0
      %349 = vmatpush1.bf16.msra.mxu0 0
      %350 = vmatprep.subr.bf16.mxu0 0
      %351 = vmatpush1.bf16.msra.mxu0 0
      %352 = vmatprep.subr.bf16.mxu0 0
      %353 = vmatpush1.bf16.msra.mxu0 0
      %354 = vmatprep.subr.bf16.mxu0 0
      %355 = vmatpush1.bf16.msra.mxu0 0
      %356 = vmatprep.subr.bf16.mxu0 0
      %357 = vmatpush1.bf16.msra.mxu0 0
      %358 = vmatprep.subr.bf16.mxu0 0
      %359 = vmatpush1.bf16.msra.mxu0 0
      %360 = vmatprep.mubr.bf16.mxu0 0
      %361 = vmatmul.mubr.bf16.gmra.mrb[0].mxu0 %v317
      %v362 = vpop.f32.mrb[0].mxu0
      %v363 = vadd.f32 %v269, %v362
      %v364 = vpop.f32.mrb[0].mxu0
      %v365 = vpop.f32.mrb[0].mxu0
      %v366 = vadd.f32 %v269, %v365
      %v367 = vpop.f32.mrb[0].mxu0
      %368 = vmatprep.mubr.bf16.mxu0 0
      %369 = vmatmul.mubr.bf16.gmra.mrb[0].mxu0 %v320
      %v370 = vpop.f32.mrb[0].mxu0
      %v371 = vadd.f32 %v269, %v370
      %v372 = vpop.f32.mrb[0].mxu0
      %v373 = vpop.f32.mrb[0].mxu0
      %v374 = vadd.f32 %v269, %v373
      %v375 = vpop.f32.mrb[0].mxu0
      %376 = vmatprep.mubr.bf16.mxu0 0
      %377 = vmatmul.mubr.bf16.gmra.mrb[0].mxu0 %v323
      %v378 = vpop.f32.mrb[0].mxu0
      %v379 = vadd.f32 %v269, %v378
      %v380 = vpop.f32.mrb[0].mxu0
      %v381 = vpop.f32.mrb[0].mxu0
      %v382 = vadd.f32 %v269, %v381
      %v383 = vpop.f32.mrb[0].mxu0
      %384 = vmatprep.mubr.bf16.mxu0 0
      %385 = vmatmul.mubr.bf16.gmra.mrb[0].mxu0 %v326
      %v386 = vpop.f32.mrb[0].mxu0
      %v387 = vadd.f32 %v269, %v386
      %v388 = vpop.f32.mrb[0].mxu0
      %v389 = vpop.f32.mrb[0].mxu0
      %v390 = vadd.f32 %v269, %v389
      %v391 = vpop.f32.mrb[0].mxu0
      %392 = vdwg.mxu0
      %v393 = vmax.f32 %v363, 0.0
      %v394 = vmax.f32 %v366, 0.0
      %v395 = vmax.f32 %v371, 0.0
      %v396 = vmax.f32 %v374, 0.0
      %v397 = vmax.f32 %v379, 0.0
      %v398 = vmax.f32 %v382, 0.0
      %v399 = vmax.f32 %v387, 0.0
      %v400 = vmax.f32 %v390, 0.0
      %vm401 = vcmask 64512
      %v402 = vsel %vm401, %v393, 0.0
      %v403 = vsel %vm401, %v394, 0.0
      %v404 = vadd.f32 %v402, %v403
      %v405 = vsel %vm401, %v395, 0.0
      %v406 = vadd.f32 %v404, %v405
      %v407 = vsel %vm401, %v396, 0.0
      %v408 = vadd.f32 %v406, %v407
      %v409 = vsel %vm401, %v397, 0.0
      %v410 = vadd.f32 %v408, %v409
      %v411 = vsel %vm401, %v398, 0.0
      %v412 = vadd.f32 %v410, %v411
      %v413 = vsel %vm401, %v399, 0.0
      %v414 = vadd.f32 %v412, %v413
      %v415 = vsel %vm401, %v400, 0.0
      %v416 = vadd.f32 %v414, %v415
      %v417 = vrot.slane %v416, 4
      %v418 = vadd.f32 %v416, %v417
      %v419 = vrot.slane %v418, 2
      %v420 = vadd.f32 %v418, %v419
      %v421 = vrot.slane %v420, 1
      %v422 = vadd.f32 %v420, %v421
      %vm423 = vcmask 57344
      %424 = vst.msk [vmem:[%s240] sm:$0x1] %vm423, %v422
      %v425 = vmul.f32 %v393, %v393
      %v426 = vmul.f32 %v394, %v394
      %v427 = vmul.f32 %v395, %v395
      %v428 = vmul.f32 %v396, %v396
      %v429 = vmul.f32 %v397, %v397
      %v430 = vmul.f32 %v398, %v398
      %v431 = vmul.f32 %v399, %v399
      %v432 = vmul.f32 %v400, %v400
      %v433 = vsel %vm401, %v425, 0.0
      %v434 = vsel %vm401, %v426, 0.0
      %v435 = vadd.f32 %v433, %v434
      %v436 = vsel %vm401, %v427, 0.0
      %v437 = vadd.f32 %v435, %v436
      %v438 = vsel %vm401, %v428, 0.0
      %v439 = vadd.f32 %v437, %v438
      %v440 = vsel %vm401, %v429, 0.0
      %v441 = vadd.f32 %v439, %v440
      %v442 = vsel %vm401, %v430, 0.0
      %v443 = vadd.f32 %v441, %v442
      %v444 = vsel %vm401, %v431, 0.0
      %v445 = vadd.f32 %v443, %v444
      %v446 = vsel %vm401, %v432, 0.0
      %v447 = vadd.f32 %v445, %v446
      %v448 = vrot.slane %v447, 4
      %v449 = vadd.f32 %v447, %v448
      %v450 = vrot.slane %v449, 2
      %v451 = vadd.f32 %v449, %v450
      %v452 = vrot.slane %v451, 1
      %v453 = vadd.f32 %v451, %v452
      %454 = vst.msk [vmem:[%s246] sm:$0x1] %vm423, %v453
      %p455 = scmp.lt.s32.totalorder %s20, 1
      %s456 = scalar_select %p455, %s20, 1
      %p457 = scmp.lt.s32.totalorder %s21, 0
      %s458 = scalar_select %p457, %s21, 0
      %s459 = sadd.s32 %s458, %s456
      %s460 = scalar_lea.vmem %s3, %s459
      %p461 = scmp.lt.s32.totalorder %s20, 1
      %s462 = scalar_select %p461, %s20, 1
      %p463 = scmp.lt.s32.totalorder %s21, 0
      %s464 = scalar_select %p463, %s21, 0
      %s465 = sadd.s32 %s464, %s462
      %s466 = scalar_lea.vmem %s4, %s465
      // Predicated region
      $region33: #{std_conv.2} parent=31 // pred_check
        %p467 = pneg %p118
      $region34: #{std_conv.2} parent=31 // pred_check_branch
        %469 = sbr.rel (%p467) target = $region36
      $region35: #{std_conv.2} parent=31 // pred_region
        _
      $region36: #{std_conv.2} parent=31 // pred_fallthru
        _
      // Predicated region
      $region37: #{std_conv.2} parent=31 // pred_check
        %p470 = pneg %p146
      $region38: #{std_conv.2} parent=31 // pred_check_branch
        %472 = sbr.rel (%p470) target = $region40
      $region39: #{std_conv.2} parent=31 // pred_region
        _
      $region40: #{std_conv.2} parent=31 // pred_fallthru
        _
    $region32: #{std_conv.2} parent=5 // pred_fallthru
      _
    %p473 = scmp.le.s32.totalorder 2, %s11
    // Predicated region
    $region41: #{std_conv.2} parent=5 // pred_check
      %p474 = pneg %p473
    $region42: #{std_conv.2} parent=5 // pred_check_branch
      %476 = sbr.rel (%p474) target = $region44
    $region43: #{std_conv.2} parent=5 // pred_region
      %s477 = ssub.s32 %s11, 2
      // Predicated region
      $region45: #{std_conv.2} parent=43 // pred_check
        %p478 = pneg %p124
      $region46: #{std_conv.2} parent=43 // pred_check_branch
        %480 = sbr.rel (%p478) target = $region48
      $region47: #{std_conv.2} parent=43 // pred_region
        %p481 = scmp.lt.s32.totalorder %s22, 1
        %s482 = scalar_select %p481, %s22, 1
        %p483 = scmp.lt.s32.totalorder %s23, 0
        %s484 = scalar_select %p483, %s23, 0
        %s485 = sadd.s32 %s484, %s482
        %s486 = scalar_lea.vmem %s3, %s485
      $region48: #{std_conv.2} parent=43 // pred_fallthru
        _
      // Predicated region
      $region49: #{std_conv.2} parent=43 // pred_check
        %p487 = pneg %p152
      $region50: #{std_conv.2} parent=43 // pred_check_branch
        %489 = sbr.rel (%p487) target = $region52
      $region51: #{std_conv.2} parent=43 // pred_region
        %p490 = scmp.lt.s32.totalorder %s22, 1
        %s491 = scalar_select %p490, %s22, 1
        %p492 = scmp.lt.s32.totalorder %s23, 0
        %s493 = scalar_select %p492, %s23, 0
        %s494 = sadd.s32 %s493, %s491
        %s495 = scalar_lea.vmem %s4, %s494
      $region52: #{std_conv.2} parent=43 // pred_fallthru
        _
    $region44: #{std_conv.2} parent=5 // pred_fallthru
      _
  $region6: #{std_conv.2} parent=0 // loop_footer
    %s15 = sadd.s32 1, %s11
  $region7: #{std_conv.2} parent=0 // loop_footer_branch
    %10 = sbr.rel target = $region3
  $region8: #{std_conv.2} parent=0 // loop_exit
    _

// kernel: std_conv.3
$region0: #{std_conv.3}
  #allocation0 [shape = 'u32[]', space=smem, size = 0x4, offset = 0x4, fixed_abs, tag = 'smem constant byte address 0x4 - core index']
  #allocation1 [shape = 'u32[144,128]{1,0:T(1,128)}', space=vmem, size = 0x12000, scoped, tag = 'internal scratch']
  %s0 = inlined_call_operand.vmem [shape: bf16[2,64,64], index: 0, kind: input, shape index: {}]
  %s1 = inlined_call_operand.vmem [shape: bf16[64,8], index: 1, kind: input, shape index: {}]
  %s2 = inlined_call_operand.vmem [shape: f32[1,8], index: 2, kind: input, shape index: {}]
  %s3 = inlined_call_operand.vmem [shape: f32[1,8], index: 3, kind: input, shape index: {}]
  %s4 = inlined_call_operand.vmem [shape: f32[1,8], index: 4, kind: input, shape index: {}]
  %s5 = inlined_call_operand.hbm [shape: bf16[2,64,8], index: 5, kind: output, shape index: {}]
  %s6 = sld [smem:[#allocation0]]
  $region53: #{std_conv.3} parent=0
    _
  %s8 = ssub.s32 1, %s6
  %s9 = scalar_select 0, %s8, %s6
  $region1: #{std_conv.3} parent=0
    #allocation2 [shape = 'u8[32768]{0}', space=vmem, size = 0x8000, scoped, tag = 'output window, operand 0']
    #allocation3 [shape = 's32[2]{0}', space=sflag, size = 0x8, scoped, tag = 'scoped memory for std_conv.3']
    %10 = vsyncpa [#allocation3], 0
    %s11 = scalar_lea.sflag [#allocation3], 1
    %12 = vsyncpa %s11, 0
    loop: start=0, step=1, limit=4
    $region2: #{std_conv.3} parent=1 // loop_pre_header
      _
    $region3: #{std_conv.3} parent=1 // loop_header
      %s14 = sphi 0, %s18
      %p15 = scmp.ge.s32.totalorder %s14, 4
      %s21 = sphi 0, %s33
      %s22 = sphi 0, %s29
      %s23 = sphi 0, %s21
      %s24 = sphi 0, %s22
      %s25 = sphi 0, %s23
      %s26 = sphi 0, %s24
      %s38 = sphi 0, %s40
      %s41 = sphi 0, %s38
      %s42 = sphi 0, %s41
      %s58 = sphi 0, %s42
      %s62 = sphi 0, %s62
      %s64 = sphi 0, %s62
      %s65 = sphi 0, %s64
      %s79 = sphi 0, %s65
      %s83 = sphi 0, %s83
      %s85 = sphi 0, %s83
      %s86 = sphi 0, %s85
      %s100 = sphi 0, %s86
      %s104 = sphi 0, %s104
      %s106 = sphi 0, %s104
      %s107 = sphi 0, %s106
      %s121 = sphi 0, %s107
      %s125 = sphi 0, %s125
      %s127 = sphi 0, %s125
      %s128 = sphi 0, %s127
      %s142 = sphi 0, %s128
      %s150 = sphi 0, %s152
      %s153 = sphi 0, %s150
      %s154 = sphi 0, %s153
      %s170 = sphi 0, %s154
    $region4: #{std_conv.3} parent=1 // loop_header_branch
      %17 = sbr.rel (%p15) target = $region8
    $region5: #{std_conv.3} parent=1 // loop_body
      %s19 = ssub.s32 %s14, 1
      %s20 = ssub.s32 %s14, 2
      %s27 = sadd.s32 1, %s22
      %p28 = scmp.ge.s32.totalorder %s27, 1
      %s29 = scalar_select %p28, 0, %s27
      %s30 = sadd.s32 1, %s21
      %s31 = scalar_select %p28, %s30, %s21
      %p32 = scmp.ge.s32.totalorder %s31, 2
      %s33 = scalar_select %p32, 0, %s31
      %s34 = ssub.s32 %s21, %s33
      %s35 = ssub.s32 %s22, %s29
      %s36 = sor.u32 %s34, %s35
      %p37 = scmp.eq.s32.totalorder %s36, 0
      %s39 = sadd.s32 %s38, 1
      %s40 = scalar_select %p37, %s38, %s39
      %p43 = pneg %p37
      %p44 = scmp.eq.s32.totalorder %s14, 1
      %p45 = por %p43, %p44
      %p46 = scmp.ne.s32.totalorder %s38, %s41
      %p47 = scmp.eq.s32.totalorder %s14, 0
      %p48 = por %p46, %p47
      %p49 = scmp.ne.s32.totalorder %s38, %s41
      %p50 = scmp.eq.s32.totalorder %s19, 1
      %p51 = por %p49, %p50
      %p52 = scmp.ne.s32.totalorder %s41, %s42
      %p53 = scmp.eq.s32.totalorder %s19, 0
      %p54 = por %p52, %p53
      %p55 = scmp.ne.s32.totalorder %s41, %s42
      %p56 = scmp.eq.s32.totalorder %s20, 1
      %p57 = por %p55, %p56
      %p59 = scmp.ne.s32.totalorder %s42, %s58
      %p60 = scmp.eq.s32.totalorder %s20, 0
      %p61 = por %p59, %p60
      %s63 = sadd.s32 %s62, 1
      %p66 = scmp.eq.s32.totalorder %s14, 1
      %p67 = scmp.ne.s32.totalorder %s62, %s64
      %p68 = scmp.eq.s32.totalorder %s14, 0
      %p69 = por %p67, %p68
      %p70 = scmp.ne.s32.totalorder %s62, %s64
      %p71 = scmp.eq.s32.totalorder %s19, 1
      %p72 = por %p70, %p71
      %p73 = scmp.ne.s32.totalorder %s64, %s65
      %p74 = scmp.eq.s32.totalorder %s19, 0
      %p75 = por %p73, %p74
      %p76 = scmp.ne.s32.totalorder %s64, %s65
      %p77 = scmp.eq.s32.totalorder %s20, 1
      %p78 = por %p76, %p77
      %p80 = scmp.ne.s32.totalorder %s65, %s79
      %p81 = scmp.eq.s32.totalorder %s20, 0
      %p82 = por %p80, %p81
      %s84 = sadd.s32 %s83, 1
      %p87 = scmp.eq.s32.totalorder %s14, 1
      %p88 = scmp.ne.s32.totalorder %s83, %s85
      %p89 = scmp.eq.s32.totalorder %s14, 0
      %p90 = por %p88, %p89
      %p91 = scmp.ne.s32.totalorder %s83, %s85
      %p92 = scmp.eq.s32.totalorder %s19, 1
      %p93 = por %p91, %p92
      %p94 = scmp.ne.s32.totalorder %s85, %s86
      %p95 = scmp.eq.s32.totalorder %s19, 0
      %p96 = por %p94, %p95
      %p97 = scmp.ne.s32.totalorder %s85, %s86
      %p98 = scmp.eq.s32.totalorder %s20, 1
      %p99 = por %p97, %p98
      %p101 = scmp.ne.s32.totalorder %s86, %s100
      %p102 = scmp.eq.s32.totalorder %s20, 0
      %p103 = por %p101, %p102
      %s105 = sadd.s32 %s104, 1
      %p108 = scmp.eq.s32.totalorder %s14, 1
      %p109 = scmp.ne.s32.totalorder %s104, %s106
      %p110 = scmp.eq.s32.totalorder %s14, 0
      %p111 = por %p109, %p110
      %p112 = scmp.ne.s32.totalorder %s104, %s106
      %p113 = scmp.eq.s32.totalorder %s19, 1
      %p114 = por %p112, %p113
      %p115 = scmp.ne.s32.totalorder %s106, %s107
      %p116 = scmp.eq.s32.totalorder %s19, 0
      %p117 = por %p115, %p116
      %p118 = scmp.ne.s32.totalorder %s106, %s107
      %p119 = scmp.eq.s32.totalorder %s20, 1
      %p120 = por %p118, %p119
      %p122 = scmp.ne.s32.totalorder %s107, %s121
      %p123 = scmp.eq.s32.totalorder %s20, 0
      %p124 = por %p122, %p123
      %s126 = sadd.s32 %s125, 1
      %p129 = scmp.eq.s32.totalorder %s14, 1
      %p130 = scmp.ne.s32.totalorder %s125, %s127
      %p131 = scmp.eq.s32.totalorder %s14, 0
      %p132 = por %p130, %p131
      %p133 = scmp.ne.s32.totalorder %s125, %s127
      %p134 = scmp.eq.s32.totalorder %s19, 1
      %p135 = por %p133, %p134
      %p136 = scmp.ne.s32.totalorder %s127, %s128
      %p137 = scmp.eq.s32.totalorder %s19, 0
      %p138 = por %p136, %p137
      %p139 = scmp.ne.s32.totalorder %s127, %s128
      %p140 = scmp.eq.s32.totalorder %s20, 1
      %p141 = por %p139, %p140
      %p143 = scmp.ne.s32.totalorder %s128, %s142
      %p144 = scmp.eq.s32.totalorder %s20, 0
      %p145 = por %p143, %p144
      %s146 = ssub.s32 %s21, %s33
      %s147 = ssub.s32 %s22, %s29
      %s148 = sor.u32 %s146, %s147
      %p149 = scmp.eq.s32.totalorder %s148, 0
      %s151 = sadd.s32 %s150, 1
      %s152 = scalar_select %p149, %s150, %s151
      %p155 = pneg %p149
      %p156 = scmp.eq.s32.totalorder %s14, 1
      %p157 = por %p155, %p156
      %p158 = scmp.ne.s32.totalorder %s150, %s153
      %p159 = scmp.eq.s32.totalorder %s14, 0
      %p160 = por %p158, %p159
      %p161 = scmp.ne.s32.totalorder %s150, %s153
      %p162 = scmp.eq.s32.totalorder %s19, 1
      %p163 = por %p161, %p162
      %p164 = scmp.ne.s32.totalorder %s153, %s154
      %p165 = scmp.eq.s32.totalorder %s19, 0
      %p166 = por %p164, %p165
      %p167 = scmp.ne.s32.totalorder %s153, %s154
      %p168 = scmp.eq.s32.totalorder %s20, 1
      %p169 = por %p167, %p168
      %p171 = scmp.ne.s32.totalorder %s154, %s170
      %p172 = scmp.eq.s32.totalorder %s20, 0
      %p173 = por %p171, %p172
      %p174 = scmp.le.s32.totalorder 1, %s14
      %p175 = scmp.lt.s32.totalorder %s14, 3
      %p176 = pnand %p174, %p175
      %p177 = pneg %p176
      // Predicated region
      $region9: #{std_conv.3} parent=5 // pred_check
        _
      $region10: #{std_conv.3} parent=5 // pred_check_branch
        %179 = sbr.rel (%p176) target = $region12
      $region11: #{std_conv.3} parent=5 // pred_region
        %s180 = ssub.s32 %s14, 1
        // Predicated region
        $region13: #{std_conv.3} parent=11 // pred_check
          %p181 = pneg %p75
        $region14: #{std_conv.3} parent=11 // pred_check_branch
          %183 = sbr.rel (%p181) target = $region16
        $region15: #{std_conv.3} parent=11 // pred_region
          _
        $region16: #{std_conv.3} parent=11 // pred_fallthru
          _
        // Predicated region
        $region17: #{std_conv.3} parent=11 // pred_check
          %p184 = pneg %p96
        $region18: #{std_conv.3} parent=11 // pred_check_branch
          %186 = sbr.rel (%p184) target = $region20
        $region19: #{std_conv.3} parent=11 // pred_region
          _
        $region20: #{std_conv.3} parent=11 // pred_fallthru
          _
        // Predicated region
        $region21: #{std_conv.3} parent=11 // pred_check
          %p187 = pneg %p117
        $region22: #{std_conv.3} parent=11 // pred_check_branch
          %189 = sbr.rel (%p187) target = $region24
        $region23: #{std_conv.3} parent=11 // pred_region
          _
        $region24: #{std_conv.3} parent=11 // pred_fallthru
          _
        // Predicated region
        $region25: #{std_conv.3} parent=11 // pred_check
          %p190 = pneg %p138
        $region26: #{std_conv.3} parent=11 // pred_check_branch
          %192 = sbr.rel (%p190) target = $region28
        $region27: #{std_conv.3} parent=11 // pred_region
          _
        $region28: #{std_conv.3} parent=11 // pred_fallthru
          _
      $region12: #{std_conv.3} parent=5 // pred_fallthru
        _
      %p193 = scmp.lt.s32.totalorder %s14, 2
      // Predicated region
      $region29: #{std_conv.3} parent=5 // pred_check
        %p194 = pneg %p193
      $region30: #{std_conv.3} parent=5 // pred_check_branch
        %196 = sbr.rel (%p194) target = $region32
      $region31: #{std_conv.3} parent=5 // pred_region
        // Predicated region
        $region33: #{std_conv.3} parent=31 // pred_check
          %p197 = pneg %p48
        $region34: #{std_conv.3} parent=31 // pred_check_branch
          %199 = sbr.rel (%p197) target = $region36
        $region35: #{std_conv.3} parent=31 // pred_region
          %s200 = smul.u32 8, %s22
          %p201 = scmp.lt.s32.totalorder %s21, 1
          %s202 = scalar_select %p201, %s21, 1
          %p203 = scmp.lt.s32.totalorder %s200, 7
          %s204 = scalar_select %p203, %s200, 7
          %s205 = smul.addr %s202, 8
          %s206 = sadd.s32 %s204, %s205
          %s207 = smul.addr %s206, 4
          %s208 = scalar_lea.vmem %s0, %s207
          %s209 = smul.u32 8, %s22
        $region36: #{std_conv.3} parent=31 // pred_fallthru
          _
      $region32: #{std_conv.3} parent=5 // pred_fallthru
        _
      %p210 = scmp.le.s32.totalorder 1, %s14
      %p211 = scmp.lt.s32.totalorder %s14, 3
      %p212 = pnand %p210, %p211
      %p213 = pneg %p212
      // Predicated region
      $region37: #{std_conv.3} parent=5 // pred_check
        _
      $region38: #{std_conv.3} parent=5 // pred_check_branch
        %215 = sbr.rel (%p212) target = $region40
      $region39: #{std_conv.3} parent=5 // pred_region
        %s216 = ssub.s32 %s14, 1
        %s217 = smul.u32 8, %s24
        %p218 = scmp.lt.s32.totalorder %s23, 1
        %s219 = scalar_select %p218, %s23, 1
        %p220 = scmp.lt.s32.totalorder %s217, 7
        %s221 = scalar_select %p220, %s217, 7
        %s222 = smul.addr %s219, 8
        %s223 = sadd.s32 %s221, %s222
        %s224 = smul.addr %s223, 4
        %s225 = scalar_lea.vmem %s0, %s224
        %p226 = pneg %p54
        %p227 = pneg %p51
        %p228 = pneg %p75
        %p229 = pneg %p72
        %p230 = pneg %p96
        %p231 = pneg %p93
        %p232 = pneg %p117
        %p233 = pneg %p114
        %p234 = pneg %p138
        %p235 = pneg %p135
        %p236 = pneg %p166
        %p237 = pneg %p163
        %s238 = sand.u32 %s153, 1
        %s239 = scalar_lea.sflag [#allocation3], %s238
        %s240 = sand.u32 %s153, 1
        %s241 = smul.addr %s240, 32
        %s242 = scalar_lea.vmem [#allocation2], %s241
        %s243 = smul.u32 8, %s24
        %p244 = scmp.lt.s32.totalorder %s23, 1
        %s245 = scalar_select %p244, %s23, 1
        %p246 = scmp.lt.s32.totalorder %s243, 7
        %s247 = scalar_select %p246, %s243, 7
        %s248 = smul.addr %s245, 8
        %s249 = sadd.s32 %s247, %s248
        %s250 = smul.addr %s249, 4
        %s251 = scalar_lea.vmem %s0, %s250
        %s252 = smul.u32 8, %s24
        %s253 = smul.u32 8, %s24
        %v255 = vld [vmem:[%s251] sm:$0xf]
        %v256 = vld [vmem:[%s251 + $0x4] sm:$0xf]
        %v257 = vld [vmem:[%s251 + $0x8] sm:$0xf]
        %v258 = vld [vmem:[%s251 + $0xc] sm:$0xf]
        %v259 = vld [vmem:[%s251 + $0x10] sm:$0xf]
        %v260 = vld [vmem:[%s251 + $0x14] sm:$0xf]
        %v261 = vld [vmem:[%s251 + $0x18] sm:$0xf]
        %v262 = vld [vmem:[%s251 + $0x1c] sm:$0xf]
        %v263 = vld [vmem:[%s1] sm:$0xf]
        %v264 = vld [vmem:[%s1 + $0x4] sm:$0xf]
        %v265 = vld [vmem:[%s1 + $0x8] sm:$0xf]
        %v266 = vld [vmem:[%s1 + $0xc] sm:$0xf]
        %v267 = vld [vmem:[%s1 + $0x10] sm:$0xf]
        %v268 = vld [vmem:[%s1 + $0x14] sm:$0xf]
        %v269 = vld [vmem:[%s1 + $0x18] sm:$0xf]
        %v270 = vld [vmem:[%s1 + $0x1c] sm:$0xf]
        %v271 = vld [vmem:[%s2] sm:$0x1]
        %v273 = vlaneseq
        %v274 = vshrl.u32 %v273, 7
        %v275 = vsub.s32 0, %v274
        %v276 = vrot.slane %v271, %v275
        %v286 = vunpack.c.l.b16 %v255
        %v287 = vunpack.c.l.b16 %v256
        %v288 = vunpack.c.l.b16 %v257
        %v289 = vunpack.c.l.b16 %v258
        %v290 = vunpack.c.l.b16 %v259
        %v291 = vunpack.c.l.b16 %v260
        %v292 = vunpack.c.l.b16 %v261
        %v293 = vunpack.c.l.b16 %v262
        %v294 = vpack.c.b16 %v287, %v286
        %v295 = vpack.c.b16 %v289, %v288
        %v296 = vpack.c.b16 %v291, %v290
        %v297 = vpack.c.b16 %v293, %v292
        %v306 = vunpack.c.l.b16 %v263
        %v307 = vunpack.c.l.b16 %v264
        %v308 = vunpack.c.l.b16 %v265
        %v309 = vunpack.c.l.b16 %v266
        %v310 = vunpack.c.l.b16 %v267
        %v311 = vunpack.c.l.b16 %v268
        %v312 = vunpack.c.l.b16 %v269
        %v313 = vunpack.c.l.b16 %v270
        %v314 = vpack.c.b16 %v307, %v306
        %v315 = vpack.c.b16 %v309, %v308
        %v316 = vpack.c.b16 %v311, %v310
        %v317 = vpack.c.b16 %v313, %v312
        %vm322 = vcmask 523264
        %v324 = vsel %vm322, %v294, 0
        %v327 = vsel %vm322, %v295, 0
        %v330 = vsel %vm322, %v296, 0
        %v333 = vsel %vm322, %v297, 0
        %335 = vmatprep.subr.bf16.mxu0 0
        %336 = vmatpush1.bf16.msra.mxu0 %v314
        %337 = vmatprep.subr.bf16.mxu0 0
        %338 = vmatpush1.bf16.msra.mxu0 %v315
        %339 = vmatprep.subr.bf16.mxu0 0
        %340 = vmatpush1.bf16.msra.mxu0 %v316
        %341 = vmatprep.subr.bf16.mxu0 0
        %342 = vmatpush1.bf16.msra.mxu0 %v317
        %343 = vmatprep.subr.bf16.mxu0 0
        %344 = vmatpush1.bf16.msra.mxu0 0
        %345 = vmatprep.subr.bf16.mxu0 0
        %346 = vmatpush1.bf16.msra.mxu0 0
        %347 = vmatprep.subr.bf16.mxu0 0
        %348 = vmatpush1.bf16.msra.mxu0 0
        %349 = vmatprep.subr.bf16.mxu0 0
        %350 = vmatpush1.bf16.msra.mxu0 0
        %351 = vmatprep.subr.bf16.mxu0 0
        %352 = vmatpush1.bf16.msra.mxu0 0
        %353 = vmatprep.subr.bf16.mxu0 0
        %354 = vmatpush1.bf16.msra.mxu0 0
        %355 = vmatprep.subr.bf16.mxu0 0
        %356 = vmatpush1.bf16.msra.mxu0 0
        %357 = vmatprep.subr.bf16.mxu0 0
        %358 = vmatpush1.bf16.msra.mxu0 0
        %359 = vmatprep.subr.bf16.mxu0 0
        %360 = vmatpush1.bf16.msra.mxu0 0
        %361 = vmatprep.subr.bf16.mxu0 0
        %362 = vmatpush1.bf16.msra.mxu0 0
        %363 = vmatprep.subr.bf16.mxu0 0
        %364 = vmatpush1.bf16.msra.mxu0 0
        %365 = vmatprep.subr.bf16.mxu0 0
        %366 = vmatpush1.bf16.msra.mxu0 0
        %367 = vmatprep.mubr.bf16.mxu0 0
        %368 = vmatmul.mubr.bf16.gmra.mrb[0].mxu0 %v324
        %v369 = vpop.f32.mrb[0].mxu0
        %v370 = vadd.f32 %v276, %v369
        %v371 = vpop.f32.mrb[0].mxu0
        %v372 = vpop.f32.mrb[0].mxu0
        %v373 = vadd.f32 %v276, %v372
        %v374 = vpop.f32.mrb[0].mxu0
        %375 = vmatprep.mubr.bf16.mxu0 0
        %376 = vmatmul.mubr.bf16.gmra.mrb[0].mxu0 %v327
        %v377 = vpop.f32.mrb[0].mxu0
        %v378 = vadd.f32 %v276, %v377
        %v379 = vpop.f32.mrb[0].mxu0
        %v380 = vpop.f32.mrb[0].mxu0
        %v381 = vadd.f32 %v276, %v380
        %v382 = vpop.f32.mrb[0].mxu0
        %383 = vmatprep.mubr.bf16.mxu0 0
        %384 = vmatmul.mubr.bf16.gmra.mrb[0].mxu0 %v330
        %v385 = vpop.f32.mrb[0].mxu0
        %v386 = vadd.f32 %v276, %v385
        %v387 = vpop.f32.mrb[0].mxu0
        %v388 = vpop.f32.mrb[0].mxu0
        %v389 = vadd.f32 %v276, %v388
        %v390 = vpop.f32.mrb[0].mxu0
        %391 = vmatprep.mubr.bf16.mxu0 0
        %392 = vmatmul.mubr.bf16.gmra.mrb[0].mxu0 %v333
        %v393 = vpop.f32.mrb[0].mxu0
        %v394 = vadd.f32 %v276, %v393
        %v395 = vpop.f32.mrb[0].mxu0
        %v396 = vpop.f32.mrb[0].mxu0
        %v397 = vadd.f32 %v276, %v396
        %v398 = vpop.f32.mrb[0].mxu0
        %399 = vdwg.mxu0
        %v400 = vmax.f32 %v370, 0.0
        %v401 = vmax.f32 %v373, 0.0
        %v402 = vmax.f32 %v378, 0.0
        %v403 = vmax.f32 %v381, 0.0
        %v404 = vmax.f32 %v386, 0.0
        %v405 = vmax.f32 %v389, 0.0
        %v406 = vmax.f32 %v394, 0.0
        %v407 = vmax.f32 %v397, 0.0
        %v408 = vld [vmem:[%s3] sm:$0x1]
        %v410 = vlaneseq
        %v411 = vshrl.u32 %v410, 7
        %v412 = vsub.s32 0, %v411
        %v413 = vrot.slane %v408, %v412
        %v415 = vmul.f32 %v400, %v413
        %v416 = vmul.f32 %v401, %v413
        %v417 = vmul.f32 %v402, %v413
        %v418 = vmul.f32 %v403, %v413
        %v419 = vmul.f32 %v404, %v413
        %v420 = vmul.f32 %v405, %v413
        %v421 = vmul.f32 %v406, %v413
        %v422 = vmul.f32 %v407, %v413
        %v423 = vld [vmem:[%s4] sm:$0x1]
        %v425 = vlaneseq
        %v426 = vshrl.u32 %v425, 7
        %v427 = vsub.s32 0, %v426
        %v428 = vrot.slane %v423, %v427
        %v430 = vadd.f32 %v415, %v428
        %v431 = vadd.f32 %v416, %v428
        %v432 = vadd.f32 %v417, %v428
        %v433 = vadd.f32 %v418, %v428
        %v434 = vadd.f32 %v419, %v428
        %v435 = vadd.f32 %v420, %v428
        %v436 = vadd.f32 %v421, %v428
        %v437 = vadd.f32 %v422, %v428
        %v438 = vpack.c.bf16 %v431, %v430
        %v439 = vpack.c.bf16 %v433, %v432
        %v440 = vpack.c.bf16 %v435, %v434
        %v441 = vpack.c.bf16 %v437, %v436
        %v446 = vunpack.c.l.b16 %v438
        %v447 = vunpack.c.h.b16 %v438
        %v448 = vunpack.c.l.b16 %v439
        %v449 = vunpack.c.h.b16 %v439
        %v450 = vunpack.c.l.b16 %v440
        %v451 = vunpack.c.h.b16 %v440
        %v452 = vunpack.c.l.b16 %v441
        %v453 = vunpack.c.h.b16 %v441
        %v454 = vpack.c.b16 %v446, %v446
        %v455 = vpack.c.b16 %v447, %v447
        %v456 = vpack.c.b16 %v448, %v448
        %v457 = vpack.c.b16 %v449, %v449
        %v458 = vpack.c.b16 %v450, %v450
        %v459 = vpack.c.b16 %v451, %v451
        %v460 = vpack.c.b16 %v452, %v452
        %v461 = vpack.c.b16 %v453, %v453
        %vm470 = vcmask 60416
        %471 = vst.msk [vmem:[%s242] sm:$0xf] %vm470, %v454
        %472 = vst.msk [vmem:[%s242 + $0x4] sm:$0xf] %vm470, %v455
        %473 = vst.msk [vmem:[%s242 + $0x8] sm:$0xf] %vm470, %v456
        %474 = vst.msk [vmem:[%s242 + $0xc] sm:$0xf] %vm470, %v457
        %475 = vst.msk [vmem:[%s242 + $0x10] sm:$0xf] %vm470, %v458
        %476 = vst.msk [vmem:[%s242 + $0x14] sm:$0xf] %vm470, %v459
        %477 = vst.msk [vmem:[%s242 + $0x18] sm:$0xf] %vm470, %v460
        %478 = vst.msk [vmem:[%s242 + $0x1c] sm:$0xf] %vm470, %v461
        %s479 = sand.u32 %s153, 1
        %s480 = scalar_lea.sflag [#allocation3], %s479
        %s481 = sand.u32 %s153, 1
        %s482 = smul.addr %s481, 32
        %s483 = scalar_lea.vmem [#allocation2], %s482
        // Predicated region
        $region41: #{std_conv.3} parent=39 // pred_check
          %p484 = pneg %p163
        $region42: #{std_conv.3} parent=39 // pred_check_branch
          %486 = sbr.rel (%p484) target = $region44
        $region43: #{std_conv.3} parent=39 // pred_region
          %s487 = smul.u32 8, %s24
          %s489 = ssub.s32 512, 512
          %490 = vsyncadd %s480, %s489
          %s491 = smul.addr %s23, 8
          %s492 = sadd.s32 %s487, %s491
          %s493 = smul.addr %s492, 64
          %s494 = scalar_lea.hbm %s5, %s493
          %s495 = sshll.u32 %s483, 4
          %s496 = int_to_ptr.vmem [resolvable:$true] %s495
          %501 = dma.vmem_to_hbm [thread:$0]  %s496, 512, %s494, %s480, 64, 64, 4
        $region44: #{std_conv.3} parent=39 // pred_fallthru
          _
      $region40: #{std_conv.3} parent=5 // pred_fallthru
        _
      %p502 = scmp.le.s32.totalorder 2, %s14
      // Predicated region
      $region45: #{std_conv.3} parent=5 // pred_check
        %p503 = pneg %p502
      $region46: #{std_conv.3} parent=5 // pred_check_branch
        %505 = sbr.rel (%p503) target = $region48
      $region47: #{std_conv.3} parent=5 // pred_region
        %s506 = ssub.s32 %s14, 2
        // Predicated region
        $region49: #{std_conv.3} parent=47 // pred_check
          %p507 = pneg %p169
        $region50: #{std_conv.3} parent=47 // pred_check_branch
          %509 = sbr.rel (%p507) target = $region52
        $region51: #{std_conv.3} parent=47 // pred_region
          %s510 = sand.u32 %s154, 1
          %s511 = scalar_lea.sflag [#allocation3], %s510
          %s512 = sand.u32 %s154, 1
          %s513 = smul.addr %s512, 32
          %s514 = scalar_lea.vmem [#allocation2], %s513
          %515 = dma.done %s511, 512
        $region52: #{std_conv.3} parent=47 // pred_fallthru
          _
      $region48: #{std_conv.3} parent=5 // pred_fallthru
        _
    $region6: #{std_conv.3} parent=1 // loop_footer
      %s18 = sadd.s32 1, %s14
    $region7: #{std_conv.3} parent=1 // loop_footer_branch
      %13 = sbr.rel target = $region3
    $region8: #{std_conv.3} parent=1 // loop_exit
      _
    %516 = vsyncpa [#allocation3], 1
    %s517 = scalar_lea.sflag [#allocation3], 1
    %518 = vsyncpa %s517, 1

</llo_original>
